<compile_context>
chip_gen: v7x
topology: tpu7x:2x2x1
jax: 0.10.0
libtpu: 0.0.40
codegen_flags: <defaults>
</compile_context>

<pallas_src>
import functools

import jax
import jax.numpy as jnp
from jax.experimental import pallas as pl
from jax.experimental.pallas import tpu as pltpu


# ----------------------------- helpers -------------------------------------

def _round_up(x, m):
    return ((x + m - 1) // m) * m


def _cdiv(a, b):
    return (a + b - 1) // b


def _pad2d(a, rows, cols):
    pr, pc = rows - a.shape[0], cols - a.shape[1]
    if pr == 0 and pc == 0:
        return a
    return jnp.pad(a, ((0, pr), (0, pc)))


# ----------------------------- kernels -------------------------------------

def _mlp_kernel(x_ref, w1_ref, b1_ref, w2_ref, b2_ref, o_ref, *, compute_dtype):
    # Fused: (x @ W1 + b1) -> ReLU -> (@ W2 + b2) -> sigmoid. f32 accumulation.
    x = x_ref[...].astype(compute_dtype)                       # in-kernel cast (no HBM pass)
    h = jnp.dot(x, w1_ref[...], preferred_element_type=jnp.float32)
    h = jnp.maximum(h + b1_ref[...], 0.0)                      # bias + ReLU in f32
    z = jnp.dot(h.astype(w2_ref.dtype), w2_ref[...],
                preferred_element_type=jnp.float32)
    o_ref[...] = jax.nn.sigmoid(z + b2_ref[...]).astype(o_ref.dtype)
    # TODO(synk): if bundle dumps show VALU-bound, switch sigmoid to
    # pl.reciprocal(1 + jnp.exp(-z), approx=True) to use the EUP approx slot.


def _mlp_kernel_ktiled(x_ref, w1_ref, b1_ref, w2_ref, b2_ref, o_ref, acc_ref,
                       *, compute_dtype):
    # Streams W1 over the trailing K grid axis into an f32 accumulator.
    k = pl.program_id(1)

    @pl.when(k == 0)
    def _():
        acc_ref[...] = jnp.zeros_like(acc_ref)

    x = x_ref[...].astype(compute_dtype)
    acc_ref[...] += jnp.dot(x, w1_ref[...], preferred_element_type=jnp.float32)

    @pl.when(k == pl.num_programs(1) - 1)
    def _():
        h = jnp.maximum(acc_ref[...] + b1_ref[...], 0.0)
        z = jnp.dot(h.astype(w2_ref.dtype), w2_ref[...],
                    preferred_element_type=jnp.float32)
        o_ref[...] = jax.nn.sigmoid(z + b2_ref[...]).astype(o_ref.dtype)


# ------------------- parameter prep (hoist out of hot path) ----------------

def prepare_decoder_mlp_params(w1, b1, w2, b2, compute_dtype=jnp.bfloat16):
    """Pad hidden/latent dims (lane axis) to multiples of 128 and cast once.

    w1: [in_features, hidden], w2: [hidden, latent] (pre-transposed vs PyTorch),
    b1/b2: [hidden]/[latent] (or [1, dim]). Call once at parameter-load time so the
    per-call path does no weight HBM traffic besides the kernel's own DMA.
    """
    cdt = jnp.dtype(compute_dtype)
    w1 = jnp.asarray(w1)
    w2 = jnp.asarray(w2)
    K, H = w1.shape
    L = w2.shape[1]
    Hp, Lp = _round_up(H, 128), _round_up(L, 128)
    return dict(
        w1=_pad2d(w1, K, Hp).astype(cdt),          # K (contraction dim) left unpadded
        b1=_pad2d(jnp.asarray(b1).reshape(1, -1), 1, Hp).astype(jnp.float32),
        w2=_pad2d(w2, Hp, Lp).astype(cdt),          # padded H rows are zero -> neutral
        b2=_pad2d(jnp.asarray(b2).reshape(1, -1), 1, Lp).astype(jnp.float32),
        dims=(K, H, L),
        compute_dtype=cdt,
    )


# ----------------------------- dispatcher ----------------------------------

def decoder_mlp_prepared(x, params, *, tb=None, k_tile=None, vmem_limit_bytes=None):
    """x: [B, in_features] -> [B, latent] in x.dtype, using prepared params."""
    K, H, L = params["dims"]
    cdt = params["compute_dtype"]
    w1, b1, w2, b2 = params["w1"], params["b1"], params["w2"], params["b2"]
    Hp, Lp = w1.shape[1], w2.shape[1]
    B = x.shape[0]
    assert x.shape[1] == K, (x.shape, K)
    out_dtype = x.dtype
    xb = jnp.dtype(x.dtype).itemsize
    ob = jnp.dtype(out_dtype).itemsize

    # Generation-aware VMEM budget (~83 MiB on 128 MiB parts, ~41 MiB on v7x's 64 MiB).
    try:
        vmem_cap = int(pltpu.get_tpu_info().vmem_capacity_bytes)
    except Exception:
        vmem_cap = 64 * 2**20          # conservative (v7x-sized) fallback
    budget = int(0.65 * vmem_cap)

    # Batch tile: multiple of the sublane packing of x's dtype; aim for >=2 grid
    # programs whenever B allows it so a second TensorCore (v7x megacore) gets work.
    sublane = max(8, 32 // max(1, xb))
    if tb is None:
        tb = sublane if B <= sublane else min(512, _round_up(_cdiv(B, 2), sublane))
    tb = max(sublane, _round_up(int(tb), sublane))

    def footprint(tb_, tk_, kt_, w_bufs):
        # Weights: W1 tile (double-buffered when streamed over K), resident W2 + biases.
        wb = tk_ * Hp * cdt.itemsize * (2 if kt_ > 1 else w_bufs)
        wb += (Hp * Lp * cdt.itemsize + (Hp + Lp) * 4) * w_bufs
        # Pipelined (double-buffered) x / out tiles.
        io = 2 * tb_ * tk_ * xb + 2 * tb_ * Lp * ob
        # Intermediates: h (f32), z (f32), in-kernel x cast, bf16 copy of h, K-acc.
        inter = tb_ * Hp * 4 + tb_ * Lp * 4 + tb_ * tk_ * cdt.itemsize
        if cdt.itemsize < 4:
            inter += tb_ * Hp * cdt.itemsize
        if kt_ > 1:
            inter += tb_ * Hp * 4
        return wb + io + inter

    def plan(w_bufs):
        tb_ = tb
        if k_tile is not None:                      # forced K streaming (mainly tests)
            tk_ = max(128, _round_up(int(k_tile), 128))
            kt_ = _cdiv(_round_up(K, tk_), tk_)
            while footprint(tb_, tk_, kt_, w_bufs) > budget and tb_ > sublane:
                tb_ = max(sublane, _round_up(tb_ // 2, sublane))
            return tb_, tk_, kt_
        tk_, kt_ = K, 1
        # 1) shrink tb (not below 128 rows) before touching resident weights.
        floor1 = max(sublane, min(tb_, 128))
        while footprint(tb_, tk_, kt_, w_bufs) > budget and tb_ > floor1:
            tb_ = max(floor1, _round_up(tb_ // 2, sublane))
        # 2) stream W1 over a K grid axis if its resident slab is still too big.
        if footprint(tb_, tk_, kt_, w_bufs) > budget and K > 128:
            tk_ = _round_up(K, 128)
            while footprint(tb_, tk_, 2, w_bufs) > budget and tk_ > 512:
                tk_ = _round_up(_cdiv(tk_, 2), 128)
            kt_ = _cdiv(_round_up(K, tk_), tk_)
        # 3) last resort: shrink tb to the sublane minimum.
        while footprint(tb_, tk_, kt_, w_bufs) > budget and tb_ > sublane:
            tb_ = max(sublane, _round_up(tb_ // 2, sublane))
        # TODO(synk): when Hp*Lp alone exceeds the budget, add an H-tiling grid axis
        # for W2 with a second f32 accumulator instead of relying on tb shrinkage.
        return tb_, tk_, kt_

    def build_and_run(w_bufs):
        tb_, tk_, kt_ = plan(w_bufs)
        fp = footprint(tb_, tk_, kt_, w_bufs)
        vlim = vmem_limit_bytes
        if vlim is None:
            vlim = int(min(max(2 * fp, 32 * 2**20, fp + (8 << 20)),
                           int(0.75 * vmem_cap)))
        wkw = dict(pipeline_mode=pl.Buffered(1)) if w_bufs == 1 else {}

        if kt_ == 1:
            grid = (_cdiv(B, tb_),)
            call = pl.pallas_call(
                functools.partial(_mlp_kernel, compute_dtype=cdt),
                out_shape=jax.ShapeDtypeStruct((B, Lp), out_dtype),
                grid_spec=pltpu.PrefetchScalarGridSpec(
                    num_scalar_prefetch=0,
                    grid=grid,
                    in_specs=[
                        pl.BlockSpec((tb_, K), lambda i: (i, 0)),          # x tile
                        pl.BlockSpec((K, Hp), lambda i: (0, 0), **wkw),    # W1 resident
                        pl.BlockSpec((1, Hp), lambda i: (0, 0), **wkw),    # b1
                        pl.BlockSpec((Hp, Lp), lambda i: (0, 0), **wkw),   # W2 resident
                        pl.BlockSpec((1, Lp), lambda i: (0, 0), **wkw),    # b2
                    ],
                    out_specs=pl.BlockSpec((tb_, Lp), lambda i: (i, 0)),
                ),
                compiler_params=pltpu.CompilerParams(
                    dimension_semantics=("parallel",),
                    vmem_limit_bytes=vlim),
            )
            out = call(x, w1, b1, w2, b2)
        else:
            # Large-W1 path: zero-pad K (of x and W1) to a multiple of tk so every K
            # block is in-bounds, then stream W1 tiles (reduction axis last, arbitrary).
            Kpt = _round_up(K, tk_)
            xk = _pad2d(x, B, Kpt)
            w1k = _pad2d(w1, Kpt, Hp)
            grid = (_cdiv(B, tb_), Kpt // tk_)
            call = pl.pallas_call(
                functools.partial(_mlp_kernel_ktiled, compute_dtype=cdt),
                out_shape=jax.ShapeDtypeStruct((B, Lp), out_dtype),
                grid_spec=pltpu.PrefetchScalarGridSpec(
                    num_scalar_prefetch=0,
                    grid=grid,
                    in_specs=[
                        pl.BlockSpec((tb_, tk_), lambda i, k: (i, k)),       # x tile
                        pl.BlockSpec((tk_, Hp), lambda i, k: (k, 0)),        # W1 stream
                        pl.BlockSpec((1, Hp), lambda i, k: (0, 0), **wkw),   # b1
                        pl.BlockSpec((Hp, Lp), lambda i, k: (0, 0), **wkw),  # W2 resident
                        pl.BlockSpec((1, Lp), lambda i, k: (0, 0), **wkw),   # b2
                    ],
                    out_specs=pl.BlockSpec((tb_, Lp), lambda i, k: (i, 0)),
                    scratch_shapes=[pltpu.VMEM((tb_, Hp), jnp.float32)],
                ),
                compiler_params=pltpu.CompilerParams(
                    dimension_semantics=("parallel", "arbitrary"),
                    vmem_limit_bytes=vlim),
            )
            out = call(xk, w1k, b1, w2, b2)
        return out[:, :L] if L != Lp else out

    try:
        return build_and_run(1)
    except (TypeError, ValueError, NotImplementedError, pltpu.LoweringException):
        # Narrow fallback: only for jax versions that reject pipeline_mode=Buffered(1).
        # Replans with doubled (default double-buffered) weight bytes in the footprint.
        return build_and_run(2)


def decoder_mlp(x, w1, b1, w2, b2, *, compute_dtype=jnp.bfloat16, tb=None,
                k_tile=None, vmem_limit_bytes=None):
    """One-shot convenience wrapper. For repeated calls, hoist
    prepare_decoder_mlp_params() to parameter-load time and call
    decoder_mlp_prepared() instead."""
    params = prepare_decoder_mlp_params(w1, b1, w2, b2, compute_dtype)
    return decoder_mlp_prepared(x, params, tb=tb, k_tile=k_tile,
                                vmem_limit_bytes=vmem_limit_bytes)


def decoder_mlp_ref(x, w1, b1, w2, b2):
    h = jnp.maximum(x @ w1 + jnp.asarray(b1).reshape(1, -1), 0.0)
    return jax.nn.sigmoid(h @ w2 + jnp.asarray(b2).reshape(1, -1))


# ----------------------------- demo / tests --------------------------------

if __name__ == "__main__":
    key = jax.random.PRNGKey(0)

    def make_inputs(key, B, Kin, Hd, Ld, dtype=jnp.float32):
        kx, k1, kb1, k2, kb2 = jax.random.split(key, 5)
        bound1 = 1.0 / (Kin ** 0.5)
        bound2 = 1.0 / (Hd ** 0.5)
        x = jax.random.normal(kx, (B, Kin), dtype=dtype)
        w1 = jax.random.uniform(k1, (Kin, Hd), dtype, -bound1, bound1)
        b1 = jax.random.uniform(kb1, (1, Hd), dtype, -bound1, bound1)
        w2 = jax.random.uniform(k2, (Hd, Ld), dtype, -bound2, bound2)
        b2 = jax.random.uniform(kb2, (1, Ld), dtype, -bound2, bound2)
        return x, w1, b1, w2, b2

    # --- Test 1: small shapes, f32 compute, prepared (hoisted) params, tight tol.
    B, Kin, Hd, Ld = 8, 32, 64, 16
    x, w1, b1, w2, b2 = make_inputs(key, B, Kin, Hd, Ld)
    ref = decoder_mlp_ref(x, w1, b1, w2, b2)

    params_f32 = prepare_decoder_mlp_params(w1, b1, w2, b2, compute_dtype=jnp.float32)
    out_f32 = jax.block_until_ready(decoder_mlp_prepared(x, params_f32))
    assert out_f32.shape == (B, Ld)
    assert jnp.allclose(out_f32, ref, atol=1e-5, rtol=1e-5)

    # --- Test 2: default bf16 compute path (the fast path on all generations).
    out_bf16 = jax.block_until_ready(decoder_mlp(x, w1, b1, w2, b2))
    assert out_bf16.shape == (B, Ld)
    assert jnp.allclose(out_bf16, ref, atol=2e-2, rtol=2e-2)

    # --- Test 3: K-streaming accumulator path + partial (non-divisible) batch tile.
    B2, Kin2, Hd2, Ld2 = 24, 256, 128, 16
    key2 = jax.random.PRNGKey(1)
    x2, w12, b12, w22, b22 = make_inputs(key2, B2, Kin2, Hd2, Ld2)
    ref2 = decoder_mlp_ref(x2, w12, b12, w22, b22)
    out_kt = jax.block_until_ready(
        decoder_mlp(x2, w12, b12, w22, b22, compute_dtype=jnp.float32, k_tile=128))
    assert out_kt.shape == (B2, Ld2)
    assert jnp.allclose(out_kt, ref2, atol=1e-4, rtol=1e-4)

    print("KERNEL_OK")
</pallas_src>

<mosaic_0001>
module attributes {stable_mosaic.version = 11 : i64} {
  func.func @_mlp_kernel(%arg0: i32, %arg1: memref<8x32xf32, #tpu.memory_space<vmem>>, %arg2: memref<32x128xf32, #tpu.memory_space<vmem>>, %arg3: memref<1x128xf32, #tpu.memory_space<vmem>>, %arg4: memref<128x128xf32, #tpu.memory_space<vmem>>, %arg5: memref<1x128xf32, #tpu.memory_space<vmem>>, %arg6: memref<8x128xf32, #tpu.memory_space<vmem>>) attributes {dimension_semantics = [#tpu.dimension_semantics<parallel>], iteration_bounds = array<i64: 1>, scalar_prefetch = 0 : i64, scratch_operands = 0 : i64, tpu.core_type = #tpu.core_type<tc>, window_params = [{transform_indices = @transform_0, window_bounds = array<i64: 8, 32>}, {pipeline_mode = #tpu.pipeline_mode<synchronous>, transform_indices = @transform_1, window_bounds = array<i64: 32, 128>}, {pipeline_mode = #tpu.pipeline_mode<synchronous>, transform_indices = @transform_2, window_bounds = array<i64: 1, 128>}, {pipeline_mode = #tpu.pipeline_mode<synchronous>, transform_indices = @transform_3, window_bounds = array<i64: 128, 128>}, {pipeline_mode = #tpu.pipeline_mode<synchronous>, transform_indices = @transform_4, window_bounds = array<i64: 1, 128>}, {transform_indices = @transform_5, window_bounds = array<i64: 8, 128>}]} {
    %c0 = arith.constant 0 : index
    %c0_0 = arith.constant 0 : index
    %0 = vector.load %arg1[%c0, %c0_0] : memref<8x32xf32, #tpu.memory_space<vmem>>, vector<8x32xf32>
    %c0_1 = arith.constant 0 : index
    %c0_2 = arith.constant 0 : index
    %1 = vector.load %arg2[%c0_1, %c0_2] : memref<32x128xf32, #tpu.memory_space<vmem>>, vector<32x128xf32>
    %cst = arith.constant dense<0.000000e+00> : vector<8x128xf32>
    %2 = tpu.matmul %0, %1, %cst {dimension_numbers = #tpu.dot_dimension_numbers<[1], [0], [0], [1], [0, 0, 1, 1], [], []>} : vector<8x32xf32>, vector<32x128xf32>, vector<8x128xf32> -> vector<8x128xf32>
    %c0_3 = arith.constant 0 : index
    %c0_4 = arith.constant 0 : index
    %3 = vector.load %arg3[%c0_3, %c0_4] : memref<1x128xf32, #tpu.memory_space<vmem>>, vector<1x128xf32>
    %4 = vector.broadcast %3 : vector<1x128xf32> to vector<8x128xf32>
    %5 = arith.addf %2, %4 : vector<8x128xf32>
    %cst_5 = arith.constant 0.000000e+00 : f32
    %6 = vector.broadcast %cst_5 : f32 to vector<8x128xf32>
    %7 = arith.maximumf %5, %6 : vector<8x128xf32>
    %c0_6 = arith.constant 0 : index
    %c0_7 = arith.constant 0 : index
    %8 = vector.load %arg4[%c0_6, %c0_7] : memref<128x128xf32, #tpu.memory_space<vmem>>, vector<128x128xf32>
    %cst_8 = arith.constant dense<0.000000e+00> : vector<8x128xf32>
    %9 = tpu.matmul %7, %8, %cst_8 {dimension_numbers = #tpu.dot_dimension_numbers<[1], [0], [0], [1], [0, 0, 1, 1], [], []>} : vector<8x128xf32>, vector<128x128xf32>, vector<8x128xf32> -> vector<8x128xf32>
    %c0_9 = arith.constant 0 : index
    %c0_10 = arith.constant 0 : index
    %10 = vector.load %arg5[%c0_9, %c0_10] : memref<1x128xf32, #tpu.memory_space<vmem>>, vector<1x128xf32>
    %11 = vector.broadcast %10 : vector<1x128xf32> to vector<8x128xf32>
    %12 = arith.addf %9, %11 : vector<8x128xf32>
    %13 = arith.negf %12 : vector<8x128xf32>
    %14 = math.exp %13 : vector<8x128xf32>
    %cst_11 = arith.constant 1.000000e+00 : f32
    %15 = vector.broadcast %cst_11 : f32 to vector<8x128xf32>
    %16 = arith.addf %15, %14 : vector<8x128xf32>
    %17 = arith.divf %15, %16 : vector<8x128xf32>
    %c0_12 = arith.constant 0 : index
    %c0_13 = arith.constant 0 : index
    %18 = vector.load %arg6[%c0_12, %c0_13] : memref<8x128xf32, #tpu.memory_space<vmem>>, vector<8x128xf32>
    tpu.vector_store %arg6[%c0_12, %c0_13], %17 {strides = array<i32>} : memref<8x128xf32, #tpu.memory_space<vmem>>, vector<8x128xf32>,
    return
  }
  func.func @transform_0(%arg0: i32) -> (i32, i32) {
    %c0_i32 = arith.constant 0 : i32
    %c0_i32_0 = arith.constant 0 : i32
    return %arg0, %c0_i32 : i32, i32
  }
  func.func @transform_1(%arg0: i32) -> (i32, i32) {
    %c0_i32 = arith.constant 0 : i32
    %c0_i32_0 = arith.constant 0 : i32
    %c0_i32_1 = arith.constant 0 : i32
    return %c0_i32, %c0_i32_0 : i32, i32
  }
  func.func @transform_2(%arg0: i32) -> (i32, i32) {
    %c0_i32 = arith.constant 0 : i32
    %c0_i32_0 = arith.constant 0 : i32
    %c0_i32_1 = arith.constant 0 : i32
    return %c0_i32, %c0_i32_0 : i32, i32
  }
  func.func @transform_3(%arg0: i32) -> (i32, i32) {
    %c0_i32 = arith.constant 0 : i32
    %c0_i32_0 = arith.constant 0 : i32
    %c0_i32_1 = arith.constant 0 : i32
    return %c0_i32, %c0_i32_0 : i32, i32
  }
  func.func @transform_4(%arg0: i32) -> (i32, i32) {
    %c0_i32 = arith.constant 0 : i32
    %c0_i32_0 = arith.constant 0 : i32
    %c0_i32_1 = arith.constant 0 : i32
    return %c0_i32, %c0_i32_0 : i32, i32
  }
  func.func @transform_5(%arg0: i32) -> (i32, i32) {
    %c0_i32 = arith.constant 0 : i32
    %c0_i32_0 = arith.constant 0 : i32
    return %arg0, %c0_i32 : i32, i32
  }
}

</mosaic_0001>

<llo_original>
// kernel: tpu_custom_call.1
$region0: #{tpu_custom_call.1}
  #allocation0 [shape = 'u32[]', space=smem, size = 0x4, offset = 0x4, fixed_abs, tag = 'smem constant byte address 0x4 - core index']
  #allocation1 [shape = 'u32[144,128]{1,0:T(1,128)}', space=vmem, size = 0x12000, scoped, tag = 'internal scratch']
  %s0 = inlined_call_operand.hbm [shape: f32[8,32], index: 0, kind: input, shape index: {}]
  %s1 = inlined_call_operand.hbm [shape: f32[32,128], index: 1, kind: input, shape index: {}]
  %s2 = inlined_call_operand.vmem [shape: f32[1,128], index: 2, kind: input, shape index: {}]
  %s3 = inlined_call_operand.hbm [shape: f32[128,128], index: 3, kind: input, shape index: {}]
  %s4 = inlined_call_operand.vmem [shape: f32[1,128], index: 4, kind: input, shape index: {}]
  %s5 = inlined_call_operand.hbm [shape: f32[8,128], index: 5, kind: output, shape index: {}]
  %s6 = sld [smem:[#allocation0]]
  $region42: #{tpu_custom_call.1} parent=0
    _
  %s8 = ssub.s32 1, %s6
  %s9 = scalar_select 0, %s8, %s6
  $region1: #{tpu_custom_call.1} parent=0
    #allocation2 [shape = 'u8[4096]{0}', space=vmem, size = 0x1000, scoped, tag = 'input window, operand 0, single buffered']
    #allocation3 [shape = 's32[1]{0}', space=sflag, size = 0x4, scoped, tag = 'scoped memory for tpu_custom_call.1']
    #allocation4 [shape = 's32[1]{0}', space=sflag, size = 0x4, scoped, tag = 'scoped memory for tpu_custom_call.1']
    #allocation5 [shape = 'u8[16384]{0}', space=vmem, size = 0x4000, scoped, tag = 'input window, operand 1, single buffered']
    #allocation6 [shape = 's32[1]{0}', space=sflag, size = 0x4, scoped, tag = 'scoped memory for tpu_custom_call.1']
    #allocation7 [shape = 'u8[65536]{0}', space=vmem, size = 0x10000, scoped, tag = 'input window, operand 3, single buffered']
    #allocation8 [shape = 'u8[4096]{0}', space=vmem, size = 0x1000, scoped, tag = 'output window, operand 0, single buffered']
    %10 = vsyncpa [#allocation3], 0
    %11 = vsyncpa [#allocation6], 0
    %12 = vsyncpa [#allocation4], 0
    // Predicated region
    $region2: #{tpu_custom_call.1} parent=1 // pred_check
      _
    $region3: #{tpu_custom_call.1} parent=1 // pred_check_branch
      %14 = sbr.rel (0) target = $region5
    $region4: #{tpu_custom_call.1} parent=1 // pred_region
      %s16 = ssub.s32 128, 128
      %17 = vsyncadd [#allocation3], %s16
      %s19 = sshll.u32 [#allocation2], 4
      %s20 = int_to_ptr.vmem [resolvable:$true] %s19
      %22 = dma.hbm_to_vmem [thread:$0]  %s0, 128, %s20, [#allocation3]
    $region5: #{tpu_custom_call.1} parent=1 // pred_fallthru
      _
    // Predicated region
    $region6: #{tpu_custom_call.1} parent=1 // pred_check
      _
    $region7: #{tpu_custom_call.1} parent=1 // pred_check_branch
      %24 = sbr.rel (0) target = $region9
    $region8: #{tpu_custom_call.1} parent=1 // pred_region
      %s26 = ssub.s32 512, 512
      %27 = vsyncadd [#allocation6], %s26
      %s28 = sshll.u32 [#allocation5], 4
      %s29 = int_to_ptr.vmem [resolvable:$true] %s28
      %34 = dma.hbm_to_vmem [thread:$0]  %s1, 512, %s29, [#allocation6], 128, 128, 8
    $region9: #{tpu_custom_call.1} parent=1 // pred_fallthru
      _
    // Predicated region
    $region10: #{tpu_custom_call.1} parent=1 // pred_check
      _
    $region11: #{tpu_custom_call.1} parent=1 // pred_check_branch
      %36 = sbr.rel (0) target = $region13
    $region12: #{tpu_custom_call.1} parent=1 // pred_region
      _
    $region13: #{tpu_custom_call.1} parent=1 // pred_fallthru
      _
    // Predicated region
    $region14: #{tpu_custom_call.1} parent=1 // pred_check
      _
    $region15: #{tpu_custom_call.1} parent=1 // pred_check_branch
      %38 = sbr.rel (0) target = $region17
    $region16: #{tpu_custom_call.1} parent=1 // pred_region
      %s40 = ssub.s32 2048, 2048
      %41 = vsyncadd [#allocation6], %s40
      %s42 = sshll.u32 [#allocation7], 4
      %s43 = int_to_ptr.vmem [resolvable:$true] %s42
      %48 = dma.hbm_to_vmem [thread:$0]  %s3, 2048, %s43, [#allocation6], 128, 128, 8
    $region17: #{tpu_custom_call.1} parent=1 // pred_fallthru
      _
    // Predicated region
    $region18: #{tpu_custom_call.1} parent=1 // pred_check
      _
    $region19: #{tpu_custom_call.1} parent=1 // pred_check_branch
      %50 = sbr.rel (0) target = $region21
    $region20: #{tpu_custom_call.1} parent=1 // pred_region
      _
    $region21: #{tpu_custom_call.1} parent=1 // pred_fallthru
      _
    // Predicated region
    $region22: #{tpu_custom_call.1} parent=1 // pred_check
      _
    $region23: #{tpu_custom_call.1} parent=1 // pred_check_branch
      %52 = sbr.rel (0) target = $region25
    $region24: #{tpu_custom_call.1} parent=1 // pred_region
      %53 = dma.done [#allocation3], 128
    $region25: #{tpu_custom_call.1} parent=1 // pred_fallthru
      _
    // Predicated region
    $region26: #{tpu_custom_call.1} parent=1 // pred_check
      _
    $region27: #{tpu_custom_call.1} parent=1 // pred_check_branch
      %55 = sbr.rel (0) target = $region29
    $region28: #{tpu_custom_call.1} parent=1 // pred_region
      %56 = dma.done [#allocation6], 512
    $region29: #{tpu_custom_call.1} parent=1 // pred_fallthru
      _
    // Predicated region
    $region30: #{tpu_custom_call.1} parent=1 // pred_check
      _
    $region31: #{tpu_custom_call.1} parent=1 // pred_check_branch
      %58 = sbr.rel (0) target = $region33
    $region32: #{tpu_custom_call.1} parent=1 // pred_region
      %59 = dma.done [#allocation6], 2048
    $region33: #{tpu_custom_call.1} parent=1 // pred_fallthru
      _
    %v60 = vld [vmem:[#allocation2] sm:$0xff]
    %v61 = vld [vmem:[#allocation5] sm:$0xff]
    %v62 = vld [vmem:[#allocation5 + $0x8] sm:$0xff]
    %v63 = vld [vmem:[#allocation5 + $0x10] sm:$0xff]
    %v64 = vld [vmem:[#allocation5 + $0x18] sm:$0xff]
    %v65 = vld [vmem:[%s2] sm:$0x1]
    %v67 = vlaneseq
    %v68 = vshrl.u32 %v67, 7
    %v69 = vsub.s32 0, %v68
    %v70 = vrot.slane %v65, %v69
    %vm72 = vcmask 261120
    %v74 = vsel %vm72, %v60, 0
    %76 = vmatprep.subr.mxu0 0.0
    %77 = vmatpush1.msra.mxu0 %v61
    %78 = vmatprep.subr.mxu0 0.0
    %79 = vmatpush1.msra.mxu0 %v62
    %80 = vmatprep.subr.mxu0 0.0
    %81 = vmatpush1.msra.mxu0 %v63
    %82 = vmatprep.subr.mxu0 0.0
    %83 = vmatpush1.msra.mxu0 %v64
    %84 = vmatprep.subr.mxu0 0.0
    %85 = vmatpush1.msra.mxu0 0.0
    %86 = vmatprep.subr.mxu0 0.0
    %87 = vmatpush1.msra.mxu0 0.0
    %88 = vmatprep.subr.mxu0 0.0
    %89 = vmatpush1.msra.mxu0 0.0
    %90 = vmatprep.subr.mxu0 0.0
    %91 = vmatpush1.msra.mxu0 0.0
    %92 = vmatprep.subr.mxu0 0.0
    %93 = vmatpush1.msra.mxu0 0.0
    %94 = vmatprep.subr.mxu0 0.0
    %95 = vmatpush1.msra.mxu0 0.0
    %96 = vmatprep.subr.mxu0 0.0
    %97 = vmatpush1.msra.mxu0 0.0
    %98 = vmatprep.subr.mxu0 0.0
    %99 = vmatpush1.msra.mxu0 0.0
    %100 = vmatprep.subr.mxu0 0.0
    %101 = vmatpush1.msra.mxu0 0.0
    %102 = vmatprep.subr.mxu0 0.0
    %103 = vmatpush1.msra.mxu0 0.0
    %104 = vmatprep.subr.mxu0 0.0
    %105 = vmatpush1.msra.mxu0 0.0
    %106 = vmatprep.subr.mxu0 0.0
    %107 = vmatpush1.msra.mxu0 0.0
    %108 = vmatprep.subr.mxu0 0.0
    %109 = vmatpush1.msra.mxu0 0.0
    %110 = vmatprep.subr.mxu0 0.0
    %111 = vmatpush1.msra.mxu0 0.0
    %112 = vmatprep.subr.mxu0 0.0
    %113 = vmatpush1.msra.mxu0 0.0
    %114 = vmatprep.subr.mxu0 0.0
    %115 = vmatpush1.msra.mxu0 0.0
    %116 = vmatprep.subr.mxu0 0.0
    %117 = vmatpush1.msra.mxu0 0.0
    %118 = vmatprep.subr.mxu0 0.0
    %119 = vmatpush1.msra.mxu0 0.0
    %120 = vmatprep.subr.mxu0 0.0
    %121 = vmatpush1.msra.mxu0 0.0
    %122 = vmatprep.subr.mxu0 0.0
    %123 = vmatpush1.msra.mxu0 0.0
    %124 = vmatprep.subr.mxu0 0.0
    %125 = vmatpush1.msra.mxu0 0.0
    %126 = vmatprep.subr.mxu0 0.0
    %127 = vmatpush1.msra.mxu0 0.0
    %128 = vmatprep.subr.mxu0 0.0
    %129 = vmatpush1.msra.mxu0 0.0
    %130 = vmatprep.subr.mxu0 0.0
    %131 = vmatpush1.msra.mxu0 0.0
    %132 = vmatprep.subr.mxu0 0.0
    %133 = vmatpush1.msra.mxu0 0.0
    %134 = vmatprep.subr.mxu0 0.0
    %135 = vmatpush1.msra.mxu0 0.0
    %136 = vmatprep.subr.mxu0 0.0
    %137 = vmatpush1.msra.mxu0 0.0
    %138 = vmatprep.subr.mxu0 0.0
    %139 = vmatpush1.msra.mxu0 0.0
    %140 = vmatprep.mubr.f32.mxu0 0.0
    %141 = vmatmul.mubr.f32.gmra.mrb[0].mxu0 %v74
    %v142 = vpop.f32.mrb[0].mxu0
    %v143 = vadd.f32 %v70, %v142
    %v144 = vpop.f32.mrb[0].mxu0
    %145 = vdwg.mxu0
    %v146 = vmax.f32 %v143, 0.0
    %v147 = vld [vmem:[#allocation7] sm:$0xff]
    %v148 = vld [vmem:[#allocation7 + $0x8] sm:$0xff]
    %v149 = vld [vmem:[#allocation7 + $0x10] sm:$0xff]
    %v150 = vld [vmem:[#allocation7 + $0x18] sm:$0xff]
    %v151 = vld [vmem:[#allocation7 + $0x20] sm:$0xff]
    %v152 = vld [vmem:[#allocation7 + $0x28] sm:$0xff]
    %v153 = vld [vmem:[#allocation7 + $0x30] sm:$0xff]
    %v154 = vld [vmem:[#allocation7 + $0x38] sm:$0xff]
    %v155 = vld [vmem:[#allocation7 + $0x40] sm:$0xff]
    %v156 = vld [vmem:[#allocation7 + $0x48] sm:$0xff]
    %v157 = vld [vmem:[#allocation7 + $0x50] sm:$0xff]
    %v158 = vld [vmem:[#allocation7 + $0x58] sm:$0xff]
    %v159 = vld [vmem:[#allocation7 + $0x60] sm:$0xff]
    %v160 = vld [vmem:[#allocation7 + $0x68] sm:$0xff]
    %v161 = vld [vmem:[#allocation7 + $0x70] sm:$0xff]
    %v162 = vld [vmem:[#allocation7 + $0x78] sm:$0xff]
    %v163 = vld [vmem:[%s4] sm:$0x1]
    %v165 = vlaneseq
    %v166 = vshrl.u32 %v165, 7
    %v167 = vsub.s32 0, %v166
    %v168 = vrot.slane %v163, %v167
    %170 = vmatprep.subr.mxu0 0.0
    %171 = vmatpush1.msra.mxu0 %v147
    %172 = vmatprep.subr.mxu0 0.0
    %173 = vmatpush1.msra.mxu0 %v148
    %174 = vmatprep.subr.mxu0 0.0
    %175 = vmatpush1.msra.mxu0 %v149
    %176 = vmatprep.subr.mxu0 0.0
    %177 = vmatpush1.msra.mxu0 %v150
    %178 = vmatprep.subr.mxu0 0.0
    %179 = vmatpush1.msra.mxu0 %v151
    %180 = vmatprep.subr.mxu0 0.0
    %181 = vmatpush1.msra.mxu0 %v152
    %182 = vmatprep.subr.mxu0 0.0
    %183 = vmatpush1.msra.mxu0 %v153
    %184 = vmatprep.subr.mxu0 0.0
    %185 = vmatpush1.msra.mxu0 %v154
    %186 = vmatprep.subr.mxu0 0.0
    %187 = vmatpush1.msra.mxu0 %v155
    %188 = vmatprep.subr.mxu0 0.0
    %189 = vmatpush1.msra.mxu0 %v156
    %190 = vmatprep.subr.mxu0 0.0
    %191 = vmatpush1.msra.mxu0 %v157
    %192 = vmatprep.subr.mxu0 0.0
    %193 = vmatpush1.msra.mxu0 %v158
    %194 = vmatprep.subr.mxu0 0.0
    %195 = vmatpush1.msra.mxu0 %v159
    %196 = vmatprep.subr.mxu0 0.0
    %197 = vmatpush1.msra.mxu0 %v160
    %198 = vmatprep.subr.mxu0 0.0
    %199 = vmatpush1.msra.mxu0 %v161
    %200 = vmatprep.subr.mxu0 0.0
    %201 = vmatpush1.msra.mxu0 %v162
    %202 = vmatprep.subr.mxu0 0.0
    %203 = vmatpush1.msra.mxu0 0.0
    %204 = vmatprep.subr.mxu0 0.0
    %205 = vmatpush1.msra.mxu0 0.0
    %206 = vmatprep.subr.mxu0 0.0
    %207 = vmatpush1.msra.mxu0 0.0
    %208 = vmatprep.subr.mxu0 0.0
    %209 = vmatpush1.msra.mxu0 0.0
    %210 = vmatprep.subr.mxu0 0.0
    %211 = vmatpush1.msra.mxu0 0.0
    %212 = vmatprep.subr.mxu0 0.0
    %213 = vmatpush1.msra.mxu0 0.0
    %214 = vmatprep.subr.mxu0 0.0
    %215 = vmatpush1.msra.mxu0 0.0
    %216 = vmatprep.subr.mxu0 0.0
    %217 = vmatpush1.msra.mxu0 0.0
    %218 = vmatprep.subr.mxu0 0.0
    %219 = vmatpush1.msra.mxu0 0.0
    %220 = vmatprep.subr.mxu0 0.0
    %221 = vmatpush1.msra.mxu0 0.0
    %222 = vmatprep.subr.mxu0 0.0
    %223 = vmatpush1.msra.mxu0 0.0
    %224 = vmatprep.subr.mxu0 0.0
    %225 = vmatpush1.msra.mxu0 0.0
    %226 = vmatprep.subr.mxu0 0.0
    %227 = vmatpush1.msra.mxu0 0.0
    %228 = vmatprep.subr.mxu0 0.0
    %229 = vmatpush1.msra.mxu0 0.0
    %230 = vmatprep.subr.mxu0 0.0
    %231 = vmatpush1.msra.mxu0 0.0
    %232 = vmatprep.subr.mxu0 0.0
    %233 = vmatpush1.msra.mxu0 0.0
    %234 = vmatprep.mubr.f32.mxu0 0.0
    %235 = vmatmul.mubr.f32.gmra.mrb[0].mxu0 %v146
    %v236 = vpop.f32.mrb[0].mxu0
    %v237 = vadd.f32 %v168, %v236
    %v238 = vpop.f32.mrb[0].mxu0
    %239 = vdwg.mxu0
    %v240 = vxor.u32 %v237, 2147483648
    %v241 = vmul.f32 %v240, 1.442695
    %v242 = vpow.pop %v241
    %v243 = vadd.f32 %v242, 1.0
    %v244 = vrcp.pop %v243
    %v245 = vmul.f32 1.0, %v244
    %246 = vst [vmem:[#allocation8] sm:$0xff] %v245
    // Predicated region
    $region34: #{tpu_custom_call.1} parent=1 // pred_check
      _
    $region35: #{tpu_custom_call.1} parent=1 // pred_check_branch
      %248 = sbr.rel (0) target = $region37
    $region36: #{tpu_custom_call.1} parent=1 // pred_region
      %s250 = ssub.s32 128, 128
      %251 = vsyncadd [#allocation4], %s250
      %s253 = sshll.u32 [#allocation8], 4
      %s254 = int_to_ptr.vmem [resolvable:$true] %s253
      %256 = dma.vmem_to_hbm [thread:$0]  %s254, 128, %s5, [#allocation4]
    $region37: #{tpu_custom_call.1} parent=1 // pred_fallthru
      _
    // Predicated region
    $region38: #{tpu_custom_call.1} parent=1 // pred_check
      _
    $region39: #{tpu_custom_call.1} parent=1 // pred_check_branch
      %258 = sbr.rel (0) target = $region41
    $region40: #{tpu_custom_call.1} parent=1 // pred_region
      %259 = dma.done [#allocation4], 128
    $region41: #{tpu_custom_call.1} parent=1 // pred_fallthru
      _
    %260 = vsyncpa [#allocation3], 1
    %261 = vsyncpa [#allocation6], 1
    %262 = vsyncpa [#allocation4], 1

</llo_original>
